<compile_context>
chip_gen: v7x
topology: tpu7x:2x2x1
jax: 0.10.0
libtpu: 0.0.40
codegen_flags: <defaults>
</compile_context>

<pallas_src>
import functools
import math

import jax
import jax.numpy as jnp
from jax.experimental import pallas as pl
from jax.experimental.pallas import tpu as pltpu

N_EMBD = 3
N_HEAD = 3


def _attn_kernel(x_ref, p_ref, o_ref, *, B, T, H):
    """x_ref: (B*T, C) input, p_ref: packed params, o_ref: (B*T, C) output."""
    BT, C = x_ref.shape
    D = C // H
    scale = 1.0 / math.sqrt(D)

    x = x_ref[...]                              # (BT, C)
    P = p_ref[...]                              # (2C+2, 3C) packed parameters
    w_qkv = P[0:C, :]                           # (C, 3C)
    b_qkv = P[C, :]                             # (3C,)
    w_proj = P[C + 1:2 * C + 1, 0:C]            # (C, C)
    b_proj = P[2 * C + 1, 0:C]                  # (C,)

    # ---- qkv projection: unrolled VPU FMAs over the tiny K=C contraction ----
    qkv = b_qkv[None, :]                        # (1, 3C) broadcasts on first add
    for c in range(C):
        qkv = qkv + x[:, c:c + 1] * w_qkv[c:c + 1, :]
    # qkv: (BT, 3C)

    q = qkv[:, 0:C]
    k = qkv[:, C:2 * C]
    v = qkv[:, 2 * C:3 * C]
    if scale != 1.0:                            # D == 1 -> scale == 1.0: dead multiply, skip
        q = q * scale

    # ---- scores, keys-last layout (B, H, Tq, Tk) ----
    if D == 1:
        # head_dim 1: per-head scores are outer products; tiny minor-dim
        # transposes put heads on slabs and keys on lanes.
        qT = jnp.transpose(q.reshape(B, T, H), (0, 2, 1))   # (B, H, T)
        kT = jnp.transpose(k.reshape(B, T, H), (0, 2, 1))   # (B, H, T)
        vT = jnp.transpose(v.reshape(B, T, H), (0, 2, 1))   # (B, H, T)
        att = qT[:, :, :, None] * kT[:, :, None, :]         # (B, H, Tq, Tk)
    else:
        # General fallback (not exercised by this config).
        # TODO(synk): for large T/D, replace with a flash-style Tk-tiled
        # online-softmax sized against per-generation VMEM (64 MiB on v7x).
        qh = q.reshape(B, T, H, D)
        kh = k.reshape(B, T, H, D)
        att = jnp.einsum("bihd,bjhd->bhij", qh, kh,
                         preferred_element_type=jnp.float32)  # (B, H, Tq, Tk)

    # ---- causal mask (row i attends to cols j <= i); -1e9 fill as in torch ----
    row = jax.lax.broadcasted_iota(jnp.int32, (T, T), 0)
    col = jax.lax.broadcasted_iota(jnp.int32, (T, T), 1)
    causal = (col <= row)[None, None, :, :]                  # (1, 1, Tq, Tk)
    att = jnp.where(causal, att, jnp.float32(-1e9))

    # ---- softmax over the key (lane) axis, numerically stabilized ----
    att = att - jnp.max(att, axis=-1, keepdims=True)
    p = jnp.exp(att)
    p = p / jnp.sum(p, axis=-1, keepdims=True)               # exact division

    # ---- attention output ----
    if D == 1:
        yT = jnp.sum(p * vT[:, :, None, :], axis=-1)         # (B, H, T)
        y = jnp.transpose(yT, (0, 2, 1)).reshape(BT, C)      # (BT, C)
    else:
        vh = v.reshape(B, T, H, D)
        y = jnp.einsum("bhij,bjhd->bihd", p, vh,
                       preferred_element_type=jnp.float32).reshape(BT, C)

    # ---- output projection: unrolled VPU FMAs, single slab store ----
    out = b_proj[None, :]
    for c in range(C):
        out = out + y[:, c:c + 1] * w_proj[c:c + 1, :]
    o_ref[...] = out.astype(o_ref.dtype)


def causal_self_attention(x, w_qkv, b_qkv, w_proj, b_proj):
    B, T, C = x.shape
    H = N_HEAD

    # Pack all parameters into one contiguous (2C+2, 3C) slab -> one input DMA
    # instead of four tiny ones (fixed per-DMA cost dominates at this size).
    P = jnp.zeros((2 * C + 2, 3 * C), jnp.float32)
    P = P.at[0:C, :].set(w_qkv)
    P = P.at[C, :].set(b_qkv.reshape(-1))
    P = P.at[C + 1:2 * C + 1, 0:C].set(w_proj)
    P = P.at[2 * C + 1, 0:C].set(b_proj.reshape(-1))

    # Flatten in the wrapper (free on a contiguous HBM array); the kernel sees
    # a single (B*T, C) slab and stores a single (B*T, C) slab.
    x_flat = x.reshape(B * T, C)

    # Collapsed grid: one invocation, everything resident in VMEM.
    # TODO(synk): once B*T grows, add a leading "parallel" batch grid axis so
    # v7x's second TensorCore can be used.
    vmem = pl.BlockSpec(memory_space=pltpu.MemorySpace.VMEM)
    out_flat = pl.pallas_call(
        functools.partial(_attn_kernel, B=B, T=T, H=H),
        out_shape=jax.ShapeDtypeStruct((B * T, C), x.dtype),
        in_specs=[vmem, vmem],
        out_specs=vmem,
    )(x_flat, P)
    return out_flat.reshape(B, T, C)


def reference(x, w_qkv, b_qkv, w_proj, b_proj):
    """Pure-JAX reference mirroring the PyTorch forward (f32 math throughout)."""
    B, T, C = x.shape
    H = N_HEAD
    D = C // H
    hp = jax.lax.Precision.HIGHEST
    qkv = jnp.dot(x, w_qkv, precision=hp) + b_qkv
    q, k, v = jnp.split(qkv, 3, axis=-1)
    q = q.reshape(B, T, H, D).transpose(0, 2, 1, 3)
    k = k.reshape(B, T, H, D).transpose(0, 2, 1, 3)
    v = v.reshape(B, T, H, D).transpose(0, 2, 1, 3)
    att = jnp.einsum("bhid,bhjd->bhij", q, k, precision=hp) * (1.0 / math.sqrt(D))
    mask = jnp.tril(jnp.ones((T, T), dtype=bool))
    att = jnp.where(mask[None, None], att, -1e9)
    att = jax.nn.softmax(att, axis=-1)
    y = jnp.einsum("bhij,bhjd->bhid", att, v, precision=hp)
    y = y.transpose(0, 2, 1, 3).reshape(B, T, C)
    return jnp.dot(y, w_proj, precision=hp) + b_proj


if __name__ == "__main__":
    B, T, C = 2, 8, N_EMBD

    key = jax.random.PRNGKey(0)
    kx, k1, k2, k3, k4 = jax.random.split(key, 5)

    x = jax.random.normal(kx, (B, T, C), dtype=jnp.float32)
    # deterministic parameter init (torch Linear-like scale); weights stored
    # transposed vs. torch, i.e. (in_features, out_features).
    w_qkv = jax.random.normal(k1, (C, 3 * C), dtype=jnp.float32) * (1.0 / math.sqrt(C))
    b_qkv = jax.random.normal(k2, (3 * C,), dtype=jnp.float32) * 0.1
    w_proj = jax.random.normal(k3, (C, C), dtype=jnp.float32) * (1.0 / math.sqrt(C))
    b_proj = jax.random.normal(k4, (C,), dtype=jnp.float32) * 0.1

    y = causal_self_attention(x, w_qkv, b_qkv, w_proj, b_proj)
    jax.block_until_ready(y)

    y_ref = reference(x, w_qkv, b_qkv, w_proj, b_proj)
    assert jnp.allclose(y, y_ref, atol=1e-5, rtol=1e-5), "mismatch vs reference"

    print("KERNEL_OK")
</pallas_src>

<mosaic_0001>
module attributes {stable_mosaic.version = 11 : i64} {
  func.func @_attn_kernel(%arg0: memref<16x3xf32, #tpu.memory_space<vmem>>, %arg1: memref<8x9xf32, #tpu.memory_space<vmem>>, %arg2: memref<16x3xf32, #tpu.memory_space<vmem>>) attributes {dimension_semantics = [], scalar_prefetch = 0 : i64, scratch_operands = 0 : i64, tpu.core_type = #tpu.core_type<tc>} {
    %c0 = arith.constant 0 : index
    %c0_0 = arith.constant 0 : index
    %0 = vector.load %arg0[%c0, %c0_0] : memref<16x3xf32, #tpu.memory_space<vmem>>, vector<16x3xf32>
    %c0_1 = arith.constant 0 : index
    %c0_2 = arith.constant 0 : index
    %1 = vector.load %arg1[%c0_1, %c0_2] : memref<8x9xf32, #tpu.memory_space<vmem>>, vector<8x9xf32>
    %2 = vector.extract_strided_slice %1 {offsets = [0, 0], sizes = [3, 9], strides = [1, 1]} : vector<8x9xf32> to vector<3x9xf32>
    %3 = vector.extract_strided_slice %1 {offsets = [3, 0], sizes = [1, 9], strides = [1, 1]} : vector<8x9xf32> to vector<1x9xf32>
    %4 = vector.shape_cast %3 : vector<1x9xf32> to vector<9xf32>
    %5 = vector.extract_strided_slice %1 {offsets = [4, 0], sizes = [3, 3], strides = [1, 1]} : vector<8x9xf32> to vector<3x3xf32>
    %6 = vector.extract_strided_slice %1 {offsets = [7, 0], sizes = [1, 3], strides = [1, 1]} : vector<8x9xf32> to vector<1x3xf32>
    %7 = vector.shape_cast %6 : vector<1x3xf32> to vector<3xf32>
    %8 = vector.shape_cast %4 : vector<9xf32> to vector<1x9xf32>
    %9 = vector.extract_strided_slice %0 {offsets = [0, 0], sizes = [16, 1], strides = [1, 1]} : vector<16x3xf32> to vector<16x1xf32>
    %10 = vector.extract_strided_slice %2 {offsets = [0, 0], sizes = [1, 9], strides = [1, 1]} : vector<3x9xf32> to vector<1x9xf32>
    %11 = vector.broadcast %9 : vector<16x1xf32> to vector<16x9xf32>
    %12 = vector.broadcast %10 : vector<1x9xf32> to vector<16x9xf32>
    %13 = arith.mulf %11, %12 : vector<16x9xf32>
    %14 = vector.broadcast %8 : vector<1x9xf32> to vector<16x9xf32>
    %15 = arith.addf %14, %13 : vector<16x9xf32>
    %16 = vector.extract_strided_slice %0 {offsets = [0, 1], sizes = [16, 1], strides = [1, 1]} : vector<16x3xf32> to vector<16x1xf32>
    %17 = vector.extract_strided_slice %2 {offsets = [1, 0], sizes = [1, 9], strides = [1, 1]} : vector<3x9xf32> to vector<1x9xf32>
    %18 = vector.broadcast %16 : vector<16x1xf32> to vector<16x9xf32>
    %19 = vector.broadcast %17 : vector<1x9xf32> to vector<16x9xf32>
    %20 = arith.mulf %18, %19 : vector<16x9xf32>
    %21 = arith.addf %15, %20 : vector<16x9xf32>
    %22 = vector.extract_strided_slice %0 {offsets = [0, 2], sizes = [16, 1], strides = [1, 1]} : vector<16x3xf32> to vector<16x1xf32>
    %23 = vector.extract_strided_slice %2 {offsets = [2, 0], sizes = [1, 9], strides = [1, 1]} : vector<3x9xf32> to vector<1x9xf32>
    %24 = vector.broadcast %22 : vector<16x1xf32> to vector<16x9xf32>
    %25 = vector.broadcast %23 : vector<1x9xf32> to vector<16x9xf32>
    %26 = arith.mulf %24, %25 : vector<16x9xf32>
    %27 = arith.addf %21, %26 : vector<16x9xf32>
    %28 = vector.extract_strided_slice %27 {offsets = [0, 0], sizes = [16, 3], strides = [1, 1]} : vector<16x9xf32> to vector<16x3xf32>
    %29 = vector.extract_strided_slice %27 {offsets = [0, 3], sizes = [16, 3], strides = [1, 1]} : vector<16x9xf32> to vector<16x3xf32>
    %30 = vector.extract_strided_slice %27 {offsets = [0, 6], sizes = [16, 3], strides = [1, 1]} : vector<16x9xf32> to vector<16x3xf32>
    %31 = vector.shape_cast %28 : vector<16x3xf32> to vector<2x8x3xf32>
    %32 = tpu.transpose %31, [0, 2, 1] : vector<2x8x3xf32> -> vector<2x3x8xf32>
    %33 = vector.shape_cast %29 : vector<16x3xf32> to vector<2x8x3xf32>
    %34 = tpu.transpose %33, [0, 2, 1] : vector<2x8x3xf32> -> vector<2x3x8xf32>
    %35 = vector.shape_cast %30 : vector<16x3xf32> to vector<2x8x3xf32>
    %36 = tpu.transpose %35, [0, 2, 1] : vector<2x8x3xf32> -> vector<2x3x8xf32>
    %37 = vector.shape_cast %32 : vector<2x3x8xf32> to vector<2x3x8x1xf32>
    %38 = vector.shape_cast %34 : vector<2x3x8xf32> to vector<2x3x1x8xf32>
    %39 = vector.broadcast %37 : vector<2x3x8x1xf32> to vector<2x3x8x8xf32>
    %40 = vector.broadcast %38 : vector<2x3x1x8xf32> to vector<2x3x8x8xf32>
    %41 = arith.mulf %39, %40 : vector<2x3x8x8xf32>
    %42 = tpu.iota {dimensions = array<i32: 0>} : vector<8x8xi32>
    %43 = tpu.iota {dimensions = array<i32: 1>} : vector<8x8xi32>
    %44 = arith.cmpi sle, %43, %42 : vector<8x8xi32>
    %45 = vector.shape_cast %44 : vector<8x8xi1> to vector<1x1x8x8xi1>
    %cst = arith.constant -1.000000e+09 : f32
    %46 = vector.shape_cast %45 : vector<1x1x8x8xi1> to vector<1x1x8x8xi1>
    %47 = vector.broadcast %46 : vector<1x1x8x8xi1> to vector<2x3x8x8xi1>
    %48 = vector.broadcast %cst : f32 to vector<2x3x8x8xf32>
    %49 = arith.select %47, %41, %48 : vector<2x3x8x8xi1>, vector<2x3x8x8xf32>
    %cst_3 = arith.constant dense<0xFF800000> : vector<2x3x8xf32>
    %50 = vector.multi_reduction <maximumf>, %49, %cst_3 [3] : vector<2x3x8x8xf32> to vector<2x3x8xf32>
    %51 = vector.shape_cast %50 : vector<2x3x8xf32> to vector<2x3x8x1xf32>
    %52 = vector.broadcast %51 : vector<2x3x8x1xf32> to vector<2x3x8x8xf32>
    %53 = arith.subf %49, %52 : vector<2x3x8x8xf32>
    %54 = math.exp %53 : vector<2x3x8x8xf32>
    %cst_4 = arith.constant dense<0.000000e+00> : vector<2x3x8xf32>
    %55 = vector.multi_reduction <add>, %54, %cst_4 [3] : vector<2x3x8x8xf32> to vector<2x3x8xf32>
    %56 = vector.shape_cast %55 : vector<2x3x8xf32> to vector<2x3x8x1xf32>
    %57 = vector.broadcast %56 : vector<2x3x8x1xf32> to vector<2x3x8x8xf32>
    %58 = arith.divf %54, %57 : vector<2x3x8x8xf32>
    %59 = vector.shape_cast %36 : vector<2x3x8xf32> to vector<2x3x1x8xf32>
    %60 = vector.broadcast %59 : vector<2x3x1x8xf32> to vector<2x3x8x8xf32>
    %61 = arith.mulf %58, %60 : vector<2x3x8x8xf32>
    %cst_5 = arith.constant dense<0.000000e+00> : vector<2x3x8xf32>
    %62 = vector.multi_reduction <add>, %61, %cst_5 [3] : vector<2x3x8x8xf32> to vector<2x3x8xf32>
    %63 = tpu.transpose %62, [0, 2, 1] : vector<2x3x8xf32> -> vector<2x8x3xf32>
    %64 = vector.shape_cast %63 : vector<2x8x3xf32> to vector<16x3xf32>
    %65 = vector.shape_cast %7 : vector<3xf32> to vector<1x3xf32>
    %66 = vector.extract_strided_slice %64 {offsets = [0, 0], sizes = [16, 1], strides = [1, 1]} : vector<16x3xf32> to vector<16x1xf32>
    %67 = vector.extract_strided_slice %5 {offsets = [0, 0], sizes = [1, 3], strides = [1, 1]} : vector<3x3xf32> to vector<1x3xf32>
    %68 = vector.broadcast %66 : vector<16x1xf32> to vector<16x3xf32>
    %69 = vector.broadcast %67 : vector<1x3xf32> to vector<16x3xf32>
    %70 = arith.mulf %68, %69 : vector<16x3xf32>
    %71 = vector.broadcast %65 : vector<1x3xf32> to vector<16x3xf32>
    %72 = arith.addf %71, %70 : vector<16x3xf32>
    %73 = vector.extract_strided_slice %64 {offsets = [0, 1], sizes = [16, 1], strides = [1, 1]} : vector<16x3xf32> to vector<16x1xf32>
    %74 = vector.extract_strided_slice %5 {offsets = [1, 0], sizes = [1, 3], strides = [1, 1]} : vector<3x3xf32> to vector<1x3xf32>
    %75 = vector.broadcast %73 : vector<16x1xf32> to vector<16x3xf32>
    %76 = vector.broadcast %74 : vector<1x3xf32> to vector<16x3xf32>
    %77 = arith.mulf %75, %76 : vector<16x3xf32>
    %78 = arith.addf %72, %77 : vector<16x3xf32>
    %79 = vector.extract_strided_slice %64 {offsets = [0, 2], sizes = [16, 1], strides = [1, 1]} : vector<16x3xf32> to vector<16x1xf32>
    %80 = vector.extract_strided_slice %5 {offsets = [2, 0], sizes = [1, 3], strides = [1, 1]} : vector<3x3xf32> to vector<1x3xf32>
    %81 = vector.broadcast %79 : vector<16x1xf32> to vector<16x3xf32>
    %82 = vector.broadcast %80 : vector<1x3xf32> to vector<16x3xf32>
    %83 = arith.mulf %81, %82 : vector<16x3xf32>
    %84 = arith.addf %78, %83 : vector<16x3xf32>
    %c0_6 = arith.constant 0 : index
    %c0_7 = arith.constant 0 : index
    %85 = vector.load %arg2[%c0_6, %c0_7] : memref<16x3xf32, #tpu.memory_space<vmem>>, vector<16x3xf32>
    tpu.vector_store %arg2[%c0_6, %c0_7], %84 {strides = array<i32>} : memref<16x3xf32, #tpu.memory_space<vmem>>, vector<16x3xf32>,
    return
  }
}

</mosaic_0001>

<llo_original>
// kernel: tpu_custom_call.1
$region0: #{tpu_custom_call.1}
  #allocation0 [shape = 'u32[]', space=smem, size = 0x4, offset = 0x4, fixed_abs, tag = 'smem constant byte address 0x4 - core index']
  #allocation1 [shape = 'u32[144,128]{1,0:T(1,128)}', space=vmem, size = 0x12000, scoped, tag = 'internal scratch']
  %s0 = inlined_call_operand.vmem [shape: f32[16,3], index: 0, kind: input, shape index: {}]
  %s1 = inlined_call_operand.vmem [shape: f32[8,9], index: 1, kind: input, shape index: {}]
  %s2 = inlined_call_operand.vmem [shape: f32[16,3], index: 2, kind: output, shape index: {}]
  %s3 = sld [smem:[#allocation0]]
  $region18: #{tpu_custom_call.1} parent=0
    _
  %s5 = ssub.s32 1, %s3
  %s6 = scalar_select 0, %s5, %s3
  // Predicated region
  $region2: #{tpu_custom_call.1} parent=0 // pred_check
    _
  $region3: #{tpu_custom_call.1} parent=0 // pred_check_branch
    %8 = sbr.rel (0) target = $region5
  $region4: #{tpu_custom_call.1} parent=0 // pred_region
    _
  $region5: #{tpu_custom_call.1} parent=0 // pred_fallthru
    _
  // Predicated region
  $region6: #{tpu_custom_call.1} parent=0 // pred_check
    _
  $region7: #{tpu_custom_call.1} parent=0 // pred_check_branch
    %10 = sbr.rel (0) target = $region9
  $region8: #{tpu_custom_call.1} parent=0 // pred_region
    _
  $region9: #{tpu_custom_call.1} parent=0 // pred_fallthru
    _
  %v11 = vld [vmem:[%s0] sm:$0xff]
  %v12 = vld [vmem:[%s0 + $0x8] sm:$0xff]
  %v13 = vld [vmem:[%s1] sm:$0xff]
  %15 = vset.pattern.permute.xlu0 0
  %16 = vperm.xlu0 %15, %v11
  %v17 = vpop.permute.xlu0 %16
  %20 = vset.pattern.permute.xlu0 0
  %21 = vperm.xlu0 %20, %v12
  %v22 = vpop.permute.xlu0 %21
  %v24 = vlaneseq
  %v25 = vshrl.u32 %v24, 7
  %v26 = vsub.s32 0, %v25
  %v27 = vrot.slane %v13, %v26
  %v28 = vmul.f32 %v17, %v27
  %v29 = vmul.f32 %v22, %v27
  %v30 = vlaneseq
  %v31 = vshrl.u32 %v30, 7
  %v32 = vsub.s32 3, %v31
  %v33 = vrot.slane %v13, %v32
  %v34 = vadd.f32 %v33, %v28
  %v35 = vadd.f32 %v33, %v29
  %36 = vset.pattern.permute.xlu0 1
  %37 = vperm.xlu0 %36, %v11
  %v38 = vpop.permute.xlu0 %37
  %40 = vset.pattern.permute.xlu0 1
  %41 = vperm.xlu0 %40, %v12
  %v42 = vpop.permute.xlu0 %41
  %v44 = vlaneseq
  %v45 = vshrl.u32 %v44, 7
  %v46 = vsub.s32 1, %v45
  %v47 = vrot.slane %v13, %v46
  %v48 = vmul.f32 %v38, %v47
  %v49 = vmul.f32 %v42, %v47
  %v50 = vadd.f32 %v34, %v48
  %v51 = vadd.f32 %v35, %v49
  %52 = vset.pattern.permute.xlu0 2
  %53 = vperm.xlu0 %52, %v11
  %v54 = vpop.permute.xlu0 %53
  %56 = vset.pattern.permute.xlu0 2
  %57 = vperm.xlu0 %56, %v12
  %v58 = vpop.permute.xlu0 %57
  %v60 = vlaneseq
  %v61 = vshrl.u32 %v60, 7
  %v62 = vsub.s32 2, %v61
  %v63 = vrot.slane %v13, %v62
  %v64 = vmul.f32 %v54, %v63
  %v65 = vmul.f32 %v58, %v63
  %v66 = vadd.f32 %v50, %v64
  %v67 = vadd.f32 %v51, %v65
  %68 = vxpose.xlu0.b32.start [1/16] %v66, 128
  %69 = vxpose.xlu0.b32.cont [2/16] 0.0, 128
  %70 = vxpose.xlu0.b32.cont [3/16] 0.0, 128
  %71 = vxpose.xlu0.b32.cont [4/16] 0.0, 128
  %72 = vxpose.xlu0.b32.cont [5/16] 0.0, 128
  %73 = vxpose.xlu0.b32.cont [6/16] 0.0, 128
  %74 = vxpose.xlu0.b32.cont [7/16] 0.0, 128
  %75 = vxpose.xlu0.b32.cont [8/16] 0.0, 128
  %76 = vxpose.xlu0.b32.cont [9/16] 0.0, 128
  %77 = vxpose.xlu0.b32.cont [10/16] 0.0, 128
  %78 = vxpose.xlu0.b32.cont [11/16] 0.0, 128
  %79 = vxpose.xlu0.b32.cont [12/16] 0.0, 128
  %80 = vxpose.xlu0.b32.cont [13/16] 0.0, 128
  %81 = vxpose.xlu0.b32.cont [14/16] 0.0, 128
  %82 = vxpose.xlu0.b32.cont [15/16] 0.0, 128
  %83 = vxpose.xlu0.b32.end [16/16] 0.0, 128
  %v84 = vpop.trf.xlu0
  %v85 = vpop.trf.xlu0
  %v86 = vpop.trf.xlu0
  %v87 = vpop.trf.xlu0
  %v88 = vpop.trf.xlu0
  %v89 = vpop.trf.xlu0
  %v90 = vpop.trf.xlu0
  %v91 = vpop.trf.xlu0
  %v92 = vpop.trf.xlu0
  %v93 = vpop.trf.xlu0
  %v94 = vpop.trf.xlu0
  %v95 = vpop.trf.xlu0
  %v96 = vpop.trf.xlu0
  %v97 = vpop.trf.xlu0
  %v98 = vpop.trf.xlu0
  %v99 = vpop.trf.xlu0
  %100 = vxpose.xlu0.b32.start [1/16] %v67, 128
  %101 = vxpose.xlu0.b32.cont [2/16] 0.0, 128
  %102 = vxpose.xlu0.b32.cont [3/16] 0.0, 128
  %103 = vxpose.xlu0.b32.cont [4/16] 0.0, 128
  %104 = vxpose.xlu0.b32.cont [5/16] 0.0, 128
  %105 = vxpose.xlu0.b32.cont [6/16] 0.0, 128
  %106 = vxpose.xlu0.b32.cont [7/16] 0.0, 128
  %107 = vxpose.xlu0.b32.cont [8/16] 0.0, 128
  %108 = vxpose.xlu0.b32.cont [9/16] 0.0, 128
  %109 = vxpose.xlu0.b32.cont [10/16] 0.0, 128
  %110 = vxpose.xlu0.b32.cont [11/16] 0.0, 128
  %111 = vxpose.xlu0.b32.cont [12/16] 0.0, 128
  %112 = vxpose.xlu0.b32.cont [13/16] 0.0, 128
  %113 = vxpose.xlu0.b32.cont [14/16] 0.0, 128
  %114 = vxpose.xlu0.b32.cont [15/16] 0.0, 128
  %115 = vxpose.xlu0.b32.end [16/16] 0.0, 128
  %v116 = vpop.trf.xlu0
  %v117 = vpop.trf.xlu0
  %v118 = vpop.trf.xlu0
  %v119 = vpop.trf.xlu0
  %v120 = vpop.trf.xlu0
  %v121 = vpop.trf.xlu0
  %v122 = vpop.trf.xlu0
  %v123 = vpop.trf.xlu0
  %v124 = vpop.trf.xlu0
  %v125 = vpop.trf.xlu0
  %v126 = vpop.trf.xlu0
  %v127 = vpop.trf.xlu0
  %v128 = vpop.trf.xlu0
  %v129 = vpop.trf.xlu0
  %v130 = vpop.trf.xlu0
  %v131 = vpop.trf.xlu0
  %134 = vrot.lane.b32.xlu0 %v66, 125
  %v135 = vpop.permute.xlu0 %134
  %136 = vrot.lane.b32.xlu0 %v67, 125
  %v137 = vpop.permute.xlu0 %136
  %140 = vxpose.xlu0.b32.start [1/16] %v135, 128
  %141 = vxpose.xlu0.b32.cont [2/16] 0.0, 128
  %142 = vxpose.xlu0.b32.cont [3/16] 0.0, 128
  %143 = vxpose.xlu0.b32.cont [4/16] 0.0, 128
  %144 = vxpose.xlu0.b32.cont [5/16] 0.0, 128
  %145 = vxpose.xlu0.b32.cont [6/16] 0.0, 128
  %146 = vxpose.xlu0.b32.cont [7/16] 0.0, 128
  %147 = vxpose.xlu0.b32.cont [8/16] 0.0, 128
  %148 = vxpose.xlu0.b32.cont [9/16] 0.0, 128
  %149 = vxpose.xlu0.b32.cont [10/16] 0.0, 128
  %150 = vxpose.xlu0.b32.cont [11/16] 0.0, 128
  %151 = vxpose.xlu0.b32.cont [12/16] 0.0, 128
  %152 = vxpose.xlu0.b32.cont [13/16] 0.0, 128
  %153 = vxpose.xlu0.b32.cont [14/16] 0.0, 128
  %154 = vxpose.xlu0.b32.cont [15/16] 0.0, 128
  %155 = vxpose.xlu0.b32.end [16/16] 0.0, 128
  %v156 = vpop.trf.xlu0
  %v157 = vpop.trf.xlu0
  %v158 = vpop.trf.xlu0
  %v159 = vpop.trf.xlu0
  %v160 = vpop.trf.xlu0
  %v161 = vpop.trf.xlu0
  %v162 = vpop.trf.xlu0
  %v163 = vpop.trf.xlu0
  %v164 = vpop.trf.xlu0
  %v165 = vpop.trf.xlu0
  %v166 = vpop.trf.xlu0
  %v167 = vpop.trf.xlu0
  %v168 = vpop.trf.xlu0
  %v169 = vpop.trf.xlu0
  %v170 = vpop.trf.xlu0
  %v171 = vpop.trf.xlu0
  %172 = vxpose.xlu0.b32.start [1/16] %v137, 128
  %173 = vxpose.xlu0.b32.cont [2/16] 0.0, 128
  %174 = vxpose.xlu0.b32.cont [3/16] 0.0, 128
  %175 = vxpose.xlu0.b32.cont [4/16] 0.0, 128
  %176 = vxpose.xlu0.b32.cont [5/16] 0.0, 128
  %177 = vxpose.xlu0.b32.cont [6/16] 0.0, 128
  %178 = vxpose.xlu0.b32.cont [7/16] 0.0, 128
  %179 = vxpose.xlu0.b32.cont [8/16] 0.0, 128
  %180 = vxpose.xlu0.b32.cont [9/16] 0.0, 128
  %181 = vxpose.xlu0.b32.cont [10/16] 0.0, 128
  %182 = vxpose.xlu0.b32.cont [11/16] 0.0, 128
  %183 = vxpose.xlu0.b32.cont [12/16] 0.0, 128
  %184 = vxpose.xlu0.b32.cont [13/16] 0.0, 128
  %185 = vxpose.xlu0.b32.cont [14/16] 0.0, 128
  %186 = vxpose.xlu0.b32.cont [15/16] 0.0, 128
  %187 = vxpose.xlu0.b32.end [16/16] 0.0, 128
  %v188 = vpop.trf.xlu0
  %v189 = vpop.trf.xlu0
  %v190 = vpop.trf.xlu0
  %v191 = vpop.trf.xlu0
  %v192 = vpop.trf.xlu0
  %v193 = vpop.trf.xlu0
  %v194 = vpop.trf.xlu0
  %v195 = vpop.trf.xlu0
  %v196 = vpop.trf.xlu0
  %v197 = vpop.trf.xlu0
  %v198 = vpop.trf.xlu0
  %v199 = vpop.trf.xlu0
  %v200 = vpop.trf.xlu0
  %v201 = vpop.trf.xlu0
  %v202 = vpop.trf.xlu0
  %v203 = vpop.trf.xlu0
  %204 = vrot.lane.b32.xlu0 %v66, 122
  %v205 = vpop.permute.xlu0 %204
  %206 = vrot.lane.b32.xlu0 %v67, 122
  %v207 = vpop.permute.xlu0 %206
  %210 = vxpose.xlu0.b32.start [1/16] %v205, 128
  %211 = vxpose.xlu0.b32.cont [2/16] 0.0, 128
  %212 = vxpose.xlu0.b32.cont [3/16] 0.0, 128
  %213 = vxpose.xlu0.b32.cont [4/16] 0.0, 128
  %214 = vxpose.xlu0.b32.cont [5/16] 0.0, 128
  %215 = vxpose.xlu0.b32.cont [6/16] 0.0, 128
  %216 = vxpose.xlu0.b32.cont [7/16] 0.0, 128
  %217 = vxpose.xlu0.b32.cont [8/16] 0.0, 128
  %218 = vxpose.xlu0.b32.cont [9/16] 0.0, 128
  %219 = vxpose.xlu0.b32.cont [10/16] 0.0, 128
  %220 = vxpose.xlu0.b32.cont [11/16] 0.0, 128
  %221 = vxpose.xlu0.b32.cont [12/16] 0.0, 128
  %222 = vxpose.xlu0.b32.cont [13/16] 0.0, 128
  %223 = vxpose.xlu0.b32.cont [14/16] 0.0, 128
  %224 = vxpose.xlu0.b32.cont [15/16] 0.0, 128
  %225 = vxpose.xlu0.b32.end [16/16] 0.0, 128
  %v226 = vpop.trf.xlu0
  %v227 = vpop.trf.xlu0
  %v228 = vpop.trf.xlu0
  %v229 = vpop.trf.xlu0
  %v230 = vpop.trf.xlu0
  %v231 = vpop.trf.xlu0
  %v232 = vpop.trf.xlu0
  %v233 = vpop.trf.xlu0
  %v234 = vpop.trf.xlu0
  %v235 = vpop.trf.xlu0
  %v236 = vpop.trf.xlu0
  %v237 = vpop.trf.xlu0
  %v238 = vpop.trf.xlu0
  %v239 = vpop.trf.xlu0
  %v240 = vpop.trf.xlu0
  %v241 = vpop.trf.xlu0
  %242 = vxpose.xlu0.b32.start [1/16] %v207, 128
  %243 = vxpose.xlu0.b32.cont [2/16] 0.0, 128
  %244 = vxpose.xlu0.b32.cont [3/16] 0.0, 128
  %245 = vxpose.xlu0.b32.cont [4/16] 0.0, 128
  %246 = vxpose.xlu0.b32.cont [5/16] 0.0, 128
  %247 = vxpose.xlu0.b32.cont [6/16] 0.0, 128
  %248 = vxpose.xlu0.b32.cont [7/16] 0.0, 128
  %249 = vxpose.xlu0.b32.cont [8/16] 0.0, 128
  %250 = vxpose.xlu0.b32.cont [9/16] 0.0, 128
  %251 = vxpose.xlu0.b32.cont [10/16] 0.0, 128
  %252 = vxpose.xlu0.b32.cont [11/16] 0.0, 128
  %253 = vxpose.xlu0.b32.cont [12/16] 0.0, 128
  %254 = vxpose.xlu0.b32.cont [13/16] 0.0, 128
  %255 = vxpose.xlu0.b32.cont [14/16] 0.0, 128
  %256 = vxpose.xlu0.b32.cont [15/16] 0.0, 128
  %257 = vxpose.xlu0.b32.end [16/16] 0.0, 128
  %v258 = vpop.trf.xlu0
  %v259 = vpop.trf.xlu0
  %v260 = vpop.trf.xlu0
  %v261 = vpop.trf.xlu0
  %v262 = vpop.trf.xlu0
  %v263 = vpop.trf.xlu0
  %v264 = vpop.trf.xlu0
  %v265 = vpop.trf.xlu0
  %v266 = vpop.trf.xlu0
  %v267 = vpop.trf.xlu0
  %v268 = vpop.trf.xlu0
  %v269 = vpop.trf.xlu0
  %v270 = vpop.trf.xlu0
  %v271 = vpop.trf.xlu0
  %v272 = vpop.trf.xlu0
  %v273 = vpop.trf.xlu0
  %v274 = vlaneseq
  %v275 = vshrl.u32 %v274, 7
  %v276 = vsub.s32 0, %v275
  %v277 = vrot.slane %v84, %v276
  %279 = vbcast.lane.b32.xlu0 %v277, 256
  %v280 = vpop.permute.xlu0 %279
  %v281 = vlaneseq
  %v282 = vshrl.u32 %v281, 7
  %v283 = vsub.s32 1, %v282
  %v284 = vrot.slane %v84, %v283
  %286 = vbcast.lane.b32.xlu0 %v284, 256
  %v287 = vpop.permute.xlu0 %286
  %v288 = vlaneseq
  %v289 = vshrl.u32 %v288, 7
  %v290 = vsub.s32 2, %v289
  %v291 = vrot.slane %v84, %v290
  %293 = vbcast.lane.b32.xlu0 %v291, 256
  %v294 = vpop.permute.xlu0 %293
  %v295 = vlaneseq
  %v296 = vshrl.u32 %v295, 7
  %v297 = vsub.s32 0, %v296
  %v298 = vrot.slane %v116, %v297
  %300 = vbcast.lane.b32.xlu0 %v298, 256
  %v301 = vpop.permute.xlu0 %300
  %v302 = vlaneseq
  %v303 = vshrl.u32 %v302, 7
  %v304 = vsub.s32 1, %v303
  %v305 = vrot.slane %v116, %v304
  %307 = vbcast.lane.b32.xlu0 %v305, 256
  %v308 = vpop.permute.xlu0 %307
  %v309 = vlaneseq
  %v310 = vshrl.u32 %v309, 7
  %v311 = vsub.s32 2, %v310
  %v312 = vrot.slane %v116, %v311
  %314 = vbcast.lane.b32.xlu0 %v312, 256
  %v315 = vpop.permute.xlu0 %314
  %v319 = vunpack.c.l.s4 1966171168
  %v320 = vunpack.c.0.s8 %v319
  %v321 = vlaneseq
  %v322 = vshrl.u32 %v321, 7
  %v323 = vsub.s32 %v320, %v322
  %v324 = vrot.slane %v156, %v323
  %v325 = vcombine.high %v324, %v324
  %v327 = vunpack.c.l.s4 1966171168
  %v328 = vunpack.c.0.s8 %v327
  %v329 = vlaneseq
  %v330 = vshrl.u32 %v329, 7
  %v331 = vsub.s32 %v328, %v330
  %v332 = vrot.slane %v324, %v331
  %v334 = vunpack.c.l.s4 1966171168
  %v335 = vunpack.c.0.s8 %v334
  %v336 = vlaneseq
  %v337 = vshrl.u32 %v336, 7
  %v338 = vsub.s32 %v335, %v337
  %v339 = vrot.slane %v325, %v338
  %v340 = vcombine.high %v332, %v332
  %v342 = vunpack.c.l.s4 1966171168
  %v343 = vunpack.c.0.s8 %v342
  %v344 = vlaneseq
  %v345 = vshrl.u32 %v344, 7
  %v346 = vsub.s32 %v343, %v345
  %v347 = vrot.slane %v188, %v346
  %v348 = vcombine.high %v347, %v347
  %v350 = vunpack.c.l.s4 1966171168
  %v351 = vunpack.c.0.s8 %v350
  %v352 = vlaneseq
  %v353 = vshrl.u32 %v352, 7
  %v354 = vsub.s32 %v351, %v353
  %v355 = vrot.slane %v347, %v354
  %v357 = vunpack.c.l.s4 1966171168
  %v358 = vunpack.c.0.s8 %v357
  %v359 = vlaneseq
  %v360 = vshrl.u32 %v359, 7
  %v361 = vsub.s32 %v358, %v360
  %v362 = vrot.slane %v348, %v361
  %v363 = vcombine.high %v355, %v355
  %v364 = vlaneseq
  %v365 = vshrl.u32 %v364, 7
  %v366 = vsub.s32 0, %v365
  %v367 = vrot.slane %v332, %v366
  %v368 = vlaneseq
  %v369 = vshrl.u32 %v368, 7
  %v370 = vsub.s32 0, %v369
  %v371 = vrot.slane %v339, %v370
  %v372 = vlaneseq
  %v373 = vshrl.u32 %v372, 7
  %v374 = vsub.s32 0, %v373
  %v375 = vrot.slane %v340, %v374
  %v376 = vlaneseq
  %v377 = vshrl.u32 %v376, 7
  %v378 = vsub.s32 0, %v377
  %v379 = vrot.slane %v355, %v378
  %v380 = vlaneseq
  %v381 = vshrl.u32 %v380, 7
  %v382 = vsub.s32 0, %v381
  %v383 = vrot.slane %v362, %v382
  %v384 = vlaneseq
  %v385 = vshrl.u32 %v384, 7
  %v386 = vsub.s32 0, %v385
  %v387 = vrot.slane %v363, %v386
  %v394 = vmul.f32 %v280, %v367
  %v395 = vmul.f32 %v287, %v371
  %v396 = vmul.f32 %v294, %v375
  %v397 = vmul.f32 %v301, %v379
  %v398 = vmul.f32 %v308, %v383
  %v399 = vmul.f32 %v315, %v387
  %v400 = vlaneseq
  %v401 = vshrl.u32 %v400, 7
  %v402 = vlaneseq
  %v403 = vand.u32 %v402, 127
  %vm404 = vcmp.le.s32.totalorder %v403, %v401
  %v405 = vsel %vm404, 1, 0
  %vm406 = vcmp.eq.s32.totalorder %v405, 1
  %v407 = vsel %vm406, %v394, -1e+09
  %v408 = vsel %vm406, %v395, -1e+09
  %v409 = vsel %vm406, %v396, -1e+09
  %v410 = vsel %vm406, %v397, -1e+09
  %v411 = vsel %vm406, %v398, -1e+09
  %v412 = vsel %vm406, %v399, -1e+09
  %vm413 = vcmask 64512
  %v414 = vsel %vm413, %v407, -inf
  %415 = vmax.xlane.f32.xlu0 %v414
  %v416 = vpop.xlane.xlu0 %415
  %v417 = vsel %vm413, %v408, -inf
  %418 = vmax.xlane.f32.xlu0 %v417
  %v419 = vpop.xlane.xlu0 %418
  %v420 = vsel %vm413, %v409, -inf
  %421 = vmax.xlane.f32.xlu0 %v420
  %v422 = vpop.xlane.xlu0 %421
  %v423 = vsel %vm413, %v410, -inf
  %424 = vmax.xlane.f32.xlu0 %v423
  %v425 = vpop.xlane.xlu0 %424
  %v426 = vsel %vm413, %v411, -inf
  %427 = vmax.xlane.f32.xlu0 %v426
  %v428 = vpop.xlane.xlu0 %427
  %v429 = vsel %vm413, %v412, -inf
  %430 = vmax.xlane.f32.xlu0 %v429
  %v431 = vpop.xlane.xlu0 %430
  %v432 = vsub.f32 %v407, %v416
  %v433 = vsub.f32 %v408, %v419
  %v434 = vsub.f32 %v409, %v422
  %v435 = vsub.f32 %v410, %v425
  %v436 = vsub.f32 %v411, %v428
  %v437 = vsub.f32 %v412, %v431
  %v438 = vmul.f32 %v432, 1.442695
  %v439 = vpow.pop %v438
  %v440 = vmul.f32 %v433, 1.442695
  %v441 = vpow.pop %v440
  %v442 = vmul.f32 %v434, 1.442695
  %v443 = vpow.pop %v442
  %v444 = vmul.f32 %v435, 1.442695
  %v445 = vpow.pop %v444
  %v446 = vmul.f32 %v436, 1.442695
  %v447 = vpow.pop %v446
  %v448 = vmul.f32 %v437, 1.442695
  %v449 = vpow.pop %v448
  %v450 = vsel %vm413, %v439, 0.0
  %451 = vadd.xlane.f32.xlu0 %v450
  %v452 = vpop.xlane.xlu0 %451
  %v453 = vsel %vm413, %v441, 0.0
  %454 = vadd.xlane.f32.xlu0 %v453
  %v455 = vpop.xlane.xlu0 %454
  %v456 = vsel %vm413, %v443, 0.0
  %457 = vadd.xlane.f32.xlu0 %v456
  %v458 = vpop.xlane.xlu0 %457
  %v459 = vsel %vm413, %v445, 0.0
  %460 = vadd.xlane.f32.xlu0 %v459
  %v461 = vpop.xlane.xlu0 %460
  %v462 = vsel %vm413, %v447, 0.0
  %463 = vadd.xlane.f32.xlu0 %v462
  %v464 = vpop.xlane.xlu0 %463
  %v465 = vsel %vm413, %v449, 0.0
  %466 = vadd.xlane.f32.xlu0 %v465
  %v467 = vpop.xlane.xlu0 %466
  %v468 = vrcp.pop %v452
  %v469 = vmul.f32 %v439, %v468
  %v470 = vrcp.pop %v455
  %v471 = vmul.f32 %v441, %v470
  %v472 = vrcp.pop %v458
  %v473 = vmul.f32 %v443, %v472
  %v474 = vrcp.pop %v461
  %v475 = vmul.f32 %v445, %v474
  %v476 = vrcp.pop %v464
  %v477 = vmul.f32 %v447, %v476
  %v478 = vrcp.pop %v467
  %v479 = vmul.f32 %v449, %v478
  %v483 = vunpack.c.l.s4 1966171168
  %v484 = vunpack.c.0.s8 %v483
  %v485 = vlaneseq
  %v486 = vshrl.u32 %v485, 7
  %v487 = vsub.s32 %v484, %v486
  %v488 = vrot.slane %v226, %v487
  %v489 = vcombine.high %v488, %v488
  %v491 = vunpack.c.l.s4 1966171168
  %v492 = vunpack.c.0.s8 %v491
  %v493 = vlaneseq
  %v494 = vshrl.u32 %v493, 7
  %v495 = vsub.s32 %v492, %v494
  %v496 = vrot.slane %v488, %v495
  %v498 = vunpack.c.l.s4 1966171168
  %v499 = vunpack.c.0.s8 %v498
  %v500 = vlaneseq
  %v501 = vshrl.u32 %v500, 7
  %v502 = vsub.s32 %v499, %v501
  %v503 = vrot.slane %v489, %v502
  %v504 = vcombine.high %v496, %v496
  %v506 = vunpack.c.l.s4 1966171168
  %v507 = vunpack.c.0.s8 %v506
  %v508 = vlaneseq
  %v509 = vshrl.u32 %v508, 7
  %v510 = vsub.s32 %v507, %v509
  %v511 = vrot.slane %v258, %v510
  %v512 = vcombine.high %v511, %v511
  %v514 = vunpack.c.l.s4 1966171168
  %v515 = vunpack.c.0.s8 %v514
  %v516 = vlaneseq
  %v517 = vshrl.u32 %v516, 7
  %v518 = vsub.s32 %v515, %v517
  %v519 = vrot.slane %v511, %v518
  %v521 = vunpack.c.l.s4 1966171168
  %v522 = vunpack.c.0.s8 %v521
  %v523 = vlaneseq
  %v524 = vshrl.u32 %v523, 7
  %v525 = vsub.s32 %v522, %v524
  %v526 = vrot.slane %v512, %v525
  %v527 = vcombine.high %v519, %v519
  %v528 = vlaneseq
  %v529 = vshrl.u32 %v528, 7
  %v530 = vsub.s32 0, %v529
  %v531 = vrot.slane %v496, %v530
  %v532 = vlaneseq
  %v533 = vshrl.u32 %v532, 7
  %v534 = vsub.s32 0, %v533
  %v535 = vrot.slane %v503, %v534
  %v536 = vlaneseq
  %v537 = vshrl.u32 %v536, 7
  %v538 = vsub.s32 0, %v537
  %v539 = vrot.slane %v504, %v538
  %v540 = vlaneseq
  %v541 = vshrl.u32 %v540, 7
  %v542 = vsub.s32 0, %v541
  %v543 = vrot.slane %v519, %v542
  %v544 = vlaneseq
  %v545 = vshrl.u32 %v544, 7
  %v546 = vsub.s32 0, %v545
  %v547 = vrot.slane %v526, %v546
  %v548 = vlaneseq
  %v549 = vshrl.u32 %v548, 7
  %v550 = vsub.s32 0, %v549
  %v551 = vrot.slane %v527, %v550
  %v558 = vmul.f32 %v469, %v531
  %v559 = vmul.f32 %v471, %v535
  %v560 = vmul.f32 %v473, %v539
  %v561 = vmul.f32 %v475, %v543
  %v562 = vmul.f32 %v477, %v547
  %v563 = vmul.f32 %v479, %v551
  %v564 = vsel %vm413, %v558, 0.0
  %565 = vadd.xlane.f32.xlu0 %v564
  %v566 = vpop.xlane.xlu0 %565
  %v567 = vsel %vm413, %v559, 0.0
  %568 = vadd.xlane.f32.xlu0 %v567
  %v569 = vpop.xlane.xlu0 %568
  %v570 = vsel %vm413, %v560, 0.0
  %571 = vadd.xlane.f32.xlu0 %v570
  %v572 = vpop.xlane.xlu0 %571
  %v573 = vsel %vm413, %v561, 0.0
  %574 = vadd.xlane.f32.xlu0 %v573
  %v575 = vpop.xlane.xlu0 %574
  %v576 = vsel %vm413, %v562, 0.0
  %577 = vadd.xlane.f32.xlu0 %v576
  %v578 = vpop.xlane.xlu0 %577
  %v579 = vsel %vm413, %v563, 0.0
  %580 = vadd.xlane.f32.xlu0 %v579
  %v581 = vpop.xlane.xlu0 %580
  %v588 = vlaneseq
  %v589 = vshrl.u32 %v588, 7
  %v590 = vsub.s32 %v403, %v589
  %v591 = vrot.slane %v566, %v590
  %v592 = vlaneseq
  %v593 = vshrl.u32 %v592, 7
  %v594 = vsub.s32 %v403, %v593
  %v595 = vrot.slane %v569, %v594
  %v596 = vlaneseq
  %v597 = vshrl.u32 %v596, 7
  %v598 = vsub.s32 %v403, %v597
  %v599 = vrot.slane %v572, %v598
  %v600 = vlaneseq
  %v601 = vshrl.u32 %v600, 7
  %v602 = vsub.s32 %v403, %v601
  %v603 = vrot.slane %v575, %v602
  %v604 = vlaneseq
  %v605 = vshrl.u32 %v604, 7
  %v606 = vsub.s32 %v403, %v605
  %v607 = vrot.slane %v578, %v606
  %v608 = vlaneseq
  %v609 = vshrl.u32 %v608, 7
  %v610 = vsub.s32 %v403, %v609
  %v611 = vrot.slane %v581, %v610
  %vm612 = vcmask 1041409
  %v613 = vsel %vm612, %v595, %v591
  %vm614 = vcmask 1042434
  %v615 = vsel %vm614, %v599, %v613
  %v616 = vsel %vm612, %v607, %v603
  %v617 = vsel %vm614, %v611, %v616
  %620 = vxpose.xlu0.b32.start [1/16] %v615, 128
  %621 = vxpose.xlu0.b32.cont [2/16] 0.0, 128
  %622 = vxpose.xlu0.b32.cont [3/16] 0.0, 128
  %623 = vxpose.xlu0.b32.cont [4/16] 0.0, 128
  %624 = vxpose.xlu0.b32.cont [5/16] 0.0, 128
  %625 = vxpose.xlu0.b32.cont [6/16] 0.0, 128
  %626 = vxpose.xlu0.b32.cont [7/16] 0.0, 128
  %627 = vxpose.xlu0.b32.cont [8/16] 0.0, 128
  %628 = vxpose.xlu0.b32.cont [9/16] 0.0, 128
  %629 = vxpose.xlu0.b32.cont [10/16] 0.0, 128
  %630 = vxpose.xlu0.b32.cont [11/16] 0.0, 128
  %631 = vxpose.xlu0.b32.cont [12/16] 0.0, 128
  %632 = vxpose.xlu0.b32.cont [13/16] 0.0, 128
  %633 = vxpose.xlu0.b32.cont [14/16] 0.0, 128
  %634 = vxpose.xlu0.b32.cont [15/16] 0.0, 128
  %635 = vxpose.xlu0.b32.end [16/16] 0.0, 128
  %v636 = vpop.trf.xlu0
  %v637 = vpop.trf.xlu0
  %v638 = vpop.trf.xlu0
  %v639 = vpop.trf.xlu0
  %v640 = vpop.trf.xlu0
  %v641 = vpop.trf.xlu0
  %v642 = vpop.trf.xlu0
  %v643 = vpop.trf.xlu0
  %v644 = vpop.trf.xlu0
  %v645 = vpop.trf.xlu0
  %v646 = vpop.trf.xlu0
  %v647 = vpop.trf.xlu0
  %v648 = vpop.trf.xlu0
  %v649 = vpop.trf.xlu0
  %v650 = vpop.trf.xlu0
  %v651 = vpop.trf.xlu0
  %652 = vxpose.xlu0.b32.start [1/16] %v617, 128
  %653 = vxpose.xlu0.b32.cont [2/16] 0.0, 128
  %654 = vxpose.xlu0.b32.cont [3/16] 0.0, 128
  %655 = vxpose.xlu0.b32.cont [4/16] 0.0, 128
  %656 = vxpose.xlu0.b32.cont [5/16] 0.0, 128
  %657 = vxpose.xlu0.b32.cont [6/16] 0.0, 128
  %658 = vxpose.xlu0.b32.cont [7/16] 0.0, 128
  %659 = vxpose.xlu0.b32.cont [8/16] 0.0, 128
  %660 = vxpose.xlu0.b32.cont [9/16] 0.0, 128
  %661 = vxpose.xlu0.b32.cont [10/16] 0.0, 128
  %662 = vxpose.xlu0.b32.cont [11/16] 0.0, 128
  %663 = vxpose.xlu0.b32.cont [12/16] 0.0, 128
  %664 = vxpose.xlu0.b32.cont [13/16] 0.0, 128
  %665 = vxpose.xlu0.b32.cont [14/16] 0.0, 128
  %666 = vxpose.xlu0.b32.cont [15/16] 0.0, 128
  %667 = vxpose.xlu0.b32.end [16/16] 0.0, 128
  %v668 = vpop.trf.xlu0
  %v669 = vpop.trf.xlu0
  %v670 = vpop.trf.xlu0
  %v671 = vpop.trf.xlu0
  %v672 = vpop.trf.xlu0
  %v673 = vpop.trf.xlu0
  %v674 = vpop.trf.xlu0
  %v675 = vpop.trf.xlu0
  %v676 = vpop.trf.xlu0
  %v677 = vpop.trf.xlu0
  %v678 = vpop.trf.xlu0
  %v679 = vpop.trf.xlu0
  %v680 = vpop.trf.xlu0
  %v681 = vpop.trf.xlu0
  %v682 = vpop.trf.xlu0
  %v683 = vpop.trf.xlu0
  %685 = vset.pattern.permute.xlu0 0
  %686 = vperm.xlu0 %685, %v636
  %v687 = vpop.permute.xlu0 %686
  %690 = vset.pattern.permute.xlu0 0
  %691 = vperm.xlu0 %690, %v668
  %v692 = vpop.permute.xlu0 %691
  %v694 = vlaneseq
  %v695 = vshrl.u32 %v694, 7
  %v696 = vsub.s32 4, %v695
  %v697 = vrot.slane %v13, %v696
  %v698 = vmul.f32 %v687, %v697
  %v699 = vmul.f32 %v692, %v697
  %v700 = vlaneseq
  %v701 = vshrl.u32 %v700, 7
  %v702 = vsub.s32 7, %v701
  %v703 = vrot.slane %v13, %v702
  %v704 = vadd.f32 %v703, %v698
  %v705 = vadd.f32 %v703, %v699
  %706 = vset.pattern.permute.xlu0 1
  %707 = vperm.xlu0 %706, %v636
  %v708 = vpop.permute.xlu0 %707
  %710 = vset.pattern.permute.xlu0 1
  %711 = vperm.xlu0 %710, %v668
  %v712 = vpop.permute.xlu0 %711
  %v714 = vlaneseq
  %v715 = vshrl.u32 %v714, 7
  %v716 = vsub.s32 5, %v715
  %v717 = vrot.slane %v13, %v716
  %v718 = vmul.f32 %v708, %v717
  %v719 = vmul.f32 %v712, %v717
  %v720 = vadd.f32 %v704, %v718
  %v721 = vadd.f32 %v705, %v719
  %722 = vset.pattern.permute.xlu0 2
  %723 = vperm.xlu0 %722, %v636
  %v724 = vpop.permute.xlu0 %723
  %726 = vset.pattern.permute.xlu0 2
  %727 = vperm.xlu0 %726, %v668
  %v728 = vpop.permute.xlu0 %727
  %v730 = vlaneseq
  %v731 = vshrl.u32 %v730, 7
  %v732 = vsub.s32 6, %v731
  %v733 = vrot.slane %v13, %v732
  %v734 = vmul.f32 %v724, %v733
  %v735 = vmul.f32 %v728, %v733
  %v736 = vadd.f32 %v720, %v734
  %v737 = vadd.f32 %v721, %v735
  %vm738 = vcmask 23552
  %739 = vst.msk [vmem:[%s2] sm:$0xff] %vm738, %v736
  %740 = vst.msk [vmem:[%s2 + $0x8] sm:$0xff] %vm738, %v737
  // Predicated region
  $region10: #{tpu_custom_call.1} parent=0 // pred_check
    _
  $region11: #{tpu_custom_call.1} parent=0 // pred_check_branch
    %742 = sbr.rel (0) target = $region13
  $region12: #{tpu_custom_call.1} parent=0 // pred_region
    _
  $region13: #{tpu_custom_call.1} parent=0 // pred_fallthru
    _
  // Predicated region
  $region14: #{tpu_custom_call.1} parent=0 // pred_check
    _
  $region15: #{tpu_custom_call.1} parent=0 // pred_check_branch
    %744 = sbr.rel (0) target = $region17
  $region16: #{tpu_custom_call.1} parent=0 // pred_region
    _
  $region17: #{tpu_custom_call.1} parent=0 // pred_fallthru
    _

</llo_original>
